<compile_context>
chip_gen: v6e
topology: v6e:2x2x1
jax: 0.10.0
libtpu: 0.0.40
codegen_flags: <defaults>
</compile_context>

<pallas_src>
import jax
import jax.numpy as jnp
from jax.experimental import pallas as pl
from jax.experimental.pallas import tpu as pltpu


# ----------------------------------------------------------------------------
# Fused kernel: conv1 (ConvDPUnit) + conv2 (ConvDPUnit) for Nb batched images.
# Works on a lane-dense (Nb*H, W*C) slab.
# ----------------------------------------------------------------------------
def _make_fused_kernel(H, W, Cin, Cout, relu2, mxu_dtype):

    def dw3x3(y, w2_ref, C):
        """3x3 depthwise conv (pad=1) on a lane-dense (R, W*C) slab, R = Nb*H.

        w2_ref holds the 9 taps pre-tiled to (9, W*C) (BN scale already
        folded).  dw shifts = lane rolls by C lanes, dh shifts = sublane
        rolls; borders are zeroed with iota masks.  h masks are per-image
        (row % H) so rolls never mix adjacent images in the slab.
        """
        WC = W * C
        R = y.shape[0]
        lane = jax.lax.broadcasted_iota(jnp.int32, (R, WC), 1)
        h = jax.lax.broadcasted_iota(jnp.int32, (R, WC), 0) % H   # per-image row
        zero = jnp.zeros_like(y)

        # in[h, w-1, c] / in[h, w+1, c]  (lane rolls on the XLU + border mask)
        y_l = jnp.where(lane >= C, pltpu.roll(y, C, 1), zero)
        y_r = jnp.where(lane < WC - C, pltpu.roll(y, WC - C, 1), zero)

        def tap(k):                       # (1, W*C), broadcasts over rows
            return w2_ref[pl.ds(k, 1), :]

        # Row-combined partial sums T_dh, then dh shifts as sublane rolls:
        #   out[h] = T0[h-1] + T1[h] + T2[h+1]
        t0 = y_l * tap(0) + y * tap(1) + y_r * tap(2)
        acc = jnp.where(h >= 1, pltpu.roll(t0, 1, 0), zero)
        t1 = y_l * tap(3) + y * tap(4) + y_r * tap(5)
        acc = acc + t1
        t2 = y_l * tap(6) + y * tap(7) + y_r * tap(8)
        acc = acc + jnp.where(h <= H - 2, pltpu.roll(t2, R - 1, 0), zero)
        return acc

    def kernel(x_ref, w1a_ref, b1a_ref, w2a_ref, b2a_ref,
               w1b_ref, b1b_ref, w2b_ref, b2b_ref, o_ref):
        # ---- unit 1: 1x1 conv as block-diag MXU matmul (bf16 in, f32 acc) --
        y = jnp.dot(x_ref[...].astype(mxu_dtype), w1a_ref[...],
                    preferred_element_type=jnp.float32) + b1a_ref[...]
        # ---- unit 1: depthwise 3x3 (BN folded into taps/bias) + ReLU -------
        y = dw3x3(y, w2a_ref, Cin) + b2a_ref[...]
        y = jnp.maximum(y, 0.0)

        # ---- unit 2: 1x1 conv as block-diag MXU matmul + bias --------------
        z = jnp.dot(y.astype(mxu_dtype), w1b_ref[...],
                    preferred_element_type=jnp.float32) + b1b_ref[...]
        # ---- unit 2: depthwise 3x3 (+ folded BN) [+ ReLU] ------------------
        z = dw3x3(z, w2b_ref, Cout) + b2b_ref[...]
        if relu2:
            z = jnp.maximum(z, 0.0)

        o_ref[...] = z.astype(o_ref.dtype)

    return kernel


# ----------------------------------------------------------------------------
# Wrapper-side parameter preparation (layout plumbing + BN folding).
# Call ONCE per model (weights are static for inference), not per forward.
# ----------------------------------------------------------------------------
def _prep_unit_kernel_params(p, W, fold_bn, mxu_dtype):
    """Block-diagonal 1x1 weight + lane-tiled taps/biases for one ConvDPUnit."""
    Cin, Cout = p["w1"].shape
    # big[w*Cin + i, v*Cout + o] = (w == v) * w1[i, o]
    w1_big = jnp.einsum("wv,io->wivo", jnp.eye(W, dtype=jnp.float32),
                        p["w1"]).reshape(W * Cin, W * Cout).astype(mxu_dtype)
    b1 = jnp.tile(p["b1"], W).reshape(1, W * Cout)                 # f32
    if fold_bn:
        taps = p["w2"] * p["scale"][None, :]           # fold BN scale into taps
        b2 = p["b2"] * p["scale"] + p["shift"]          # fold BN shift into bias
    else:
        taps = p["w2"]
        b2 = p["b2"]
    w2 = jnp.tile(taps, (1, W))                         # (9, W*Cout), lane-dense
    b2 = jnp.tile(b2, W).reshape(1, W * Cout)
    return w1_big, b1, w2, b2


def prepare_conv4layer_params(params1, params2, W, with_bn_relu=True,
                              mxu_dtype=jnp.bfloat16):
    u1 = _prep_unit_kernel_params(params1, W, True, mxu_dtype)
    u2 = _prep_unit_kernel_params(params2, W, with_bn_relu, mxu_dtype)
    return u1 + u2


def _pick_images_per_block(N, H, max_rows=128):
    """Largest divisor Nb of N with Nb*H <= max_rows (vreg-pressure cap).

    On v7x one may prefer keeping >= 2 'parallel' grid steps (2 TensorCores)
    once Nb*H already reaches ~64+ rows; at tiny shapes batch folding wins.
    """
    nb = 1
    for d in range(1, N + 1):
        if N % d == 0 and d * H <= max_rows:
            nb = d
    return nb


# ----------------------------------------------------------------------------
# Conv4layerBlock forward (NCHW in/out, like PyTorch).
# ----------------------------------------------------------------------------
def conv4layer_block(x_nchw, prepped, with_bn_relu=True,
                     mxu_dtype=jnp.bfloat16, out_dtype=jnp.float32):
    N, Cin, H, W = x_nchw.shape
    w1a, b1a, w2a, b2a, w1b, b1b, w2b, b2b = prepped
    WCin = W * Cin
    WCout = w1b.shape[1]
    Cout = WCout // W

    # Lane-density guards.  TODO(synk): pad W*C up to a multiple of 128 in the
    # wrapper for shapes that don't satisfy this instead of asserting.
    assert WCin % 128 == 0 and WCout % 128 == 0, (WCin, WCout)
    assert H >= 2 and W >= 2

    # Batched blocks: Nb images per grid step, flattened to (Nb*H, W*C) rows.
    Nb = _pick_images_per_block(N, H)
    R = Nb * H
    assert (R % 8 == 0) or (N // Nb == 1), R   # (8,128) block divisibility

    # NCHW -> lane-dense (N*H, W*Cin).  (Wrapper-side layout plumbing; a real
    # NHWC model pipeline could drop the transposes entirely.)
    x = jnp.transpose(x_nchw, (0, 2, 3, 1)).reshape(N * H, WCin)

    kernel = _make_fused_kernel(H, W, Cin, Cout, with_bn_relu, mxu_dtype)
    rep = lambda n: (0, 0)      # weights: same block every step (stay resident)

    out = pl.pallas_call(
        kernel,
        out_shape=jax.ShapeDtypeStruct((N * H, WCout), out_dtype),
        grid=(N // Nb,),
        in_specs=[
            pl.BlockSpec((R, WCin), lambda n: (n, 0)),    # x slab
            pl.BlockSpec((WCin, WCin), rep),              # w1a (block-diag)
            pl.BlockSpec((1, WCin), rep),                 # b1a
            pl.BlockSpec((9, WCin), rep),                 # w2a taps (BN folded)
            pl.BlockSpec((1, WCin), rep),                 # b2a (BN folded)
            pl.BlockSpec((WCin, WCout), rep),             # w1b (block-diag)
            pl.BlockSpec((1, WCout), rep),                # b1b
            pl.BlockSpec((9, WCout), rep),                # w2b taps
            pl.BlockSpec((1, WCout), rep),                # b2b
        ],
        out_specs=pl.BlockSpec((R, WCout), lambda n: (n, 0)),
        compiler_params=pltpu.CompilerParams(
            dimension_semantics=("parallel",)),
    )(x, w1a, b1a, w2a, b2a, w1b, b1b, w2b, b2b)

    return jnp.transpose(out.reshape(N, H, W, Cout), (0, 3, 1, 2))


# ----------------------------------------------------------------------------
# Parameter init (deterministic, PyTorch shapes) + kernel-layout conversion.
# ----------------------------------------------------------------------------
def init_convdp_params(key, cin, cout, with_bn_relu):
    ks = jax.random.split(key, 8)
    w1_t = 0.1 * jax.random.normal(ks[0], (cout, cin, 1, 1), jnp.float32)
    b1 = 0.1 * jax.random.normal(ks[1], (cout,), jnp.float32)
    w2_t = 0.1 * jax.random.normal(ks[2], (cout, 1, 3, 3), jnp.float32)
    b2 = 0.1 * jax.random.normal(ks[3], (cout,), jnp.float32)

    if with_bn_relu:
        gamma = 1.0 + 0.1 * jax.random.normal(ks[4], (cout,), jnp.float32)
        beta = 0.1 * jax.random.normal(ks[5], (cout,), jnp.float32)
        mean = 0.1 * jax.random.normal(ks[6], (cout,), jnp.float32)
        var = jnp.abs(jax.random.normal(ks[7], (cout,), jnp.float32)) + 0.5
    else:
        gamma = jnp.ones((cout,), jnp.float32)
        beta = jnp.zeros((cout,), jnp.float32)
        mean = jnp.zeros((cout,), jnp.float32)
        var = jnp.ones((cout,), jnp.float32)
    eps = 1e-5
    scale = gamma / jnp.sqrt(var + eps)     # BN eval folded: y = x*scale+shift
    shift = beta - mean * scale

    return {
        # PyTorch-shaped (for the pure-JAX reference)
        "w1_t": w1_t, "w2_t": w2_t,
        # kernel-layout
        "w1": w1_t.reshape(cout, cin).T,          # (Cin, Cout)
        "w2": w2_t.reshape(cout, 9).T,            # (9, Cout), tap = dh*3+dw
        "b1": b1, "b2": b2, "scale": scale, "shift": shift,
    }


# ----------------------------------------------------------------------------
# Pure-JAX reference (lax.conv) for correctness checking.
# mxu_dtype lets the reference mirror the kernel's bf16-operand 1x1 matmuls.
# ----------------------------------------------------------------------------
def _ref_convdp_nchw(x, p, with_bn_relu, mxu_dtype=jnp.float32):
    cout = p["w1_t"].shape[0]
    y = jax.lax.conv_general_dilated(
        x.astype(mxu_dtype), p["w1_t"].astype(mxu_dtype), (1, 1), "VALID",
        dimension_numbers=("NCHW", "OIHW", "NCHW"),
        preferred_element_type=jnp.float32)
    y = y + p["b1"].reshape(1, -1, 1, 1)
    y = jax.lax.conv_general_dilated(
        y, p["w2_t"], (1, 1), ((1, 1), (1, 1)),
        dimension_numbers=("NCHW", "OIHW", "NCHW"),
        feature_group_count=cout)
    y = y + p["b2"].reshape(1, -1, 1, 1)
    if with_bn_relu:
        y = y * p["scale"].reshape(1, -1, 1, 1) + p["shift"].reshape(1, -1, 1, 1)
        y = jnp.maximum(y, 0.0)
    return y


def _ref_block(x, p1, p2, with_bn_relu=True, mxu_dtype=jnp.float32):
    y = _ref_convdp_nchw(x, p1, True, mxu_dtype)
    return _ref_convdp_nchw(y, p2, with_bn_relu, mxu_dtype)


# ----------------------------------------------------------------------------
if __name__ == "__main__":
    key = jax.random.PRNGKey(0)
    k_x, k_p1, k_p2 = jax.random.split(key, 3)

    N, in_channels, out_channels, H, W = 2, 8, 16, 16, 16
    with_bn_relu = True

    x = jax.random.normal(k_x, (N, in_channels, H, W), jnp.float32)   # NCHW
    params1 = init_convdp_params(k_p1, in_channels, in_channels, True)
    params2 = init_convdp_params(k_p2, in_channels, out_channels, with_bn_relu)

    # TODO(synk): BatchNorm is implemented in eval/inference mode only; the
    # training-mode batch-statistics update has no place in a pure fwd kernel.

    # ---- f32-MXU path: tight numerical check against the f32 reference ----
    prep_f32 = prepare_conv4layer_params(params1, params2, W, with_bn_relu,
                                         mxu_dtype=jnp.float32)
    out_f32 = jax.block_until_ready(
        conv4layer_block(x, prep_f32, with_bn_relu, mxu_dtype=jnp.float32))
    ref_f32 = jax.block_until_ready(
        _ref_block(x, params1, params2, with_bn_relu))
    assert out_f32.shape == (N, out_channels, H, W), out_f32.shape
    assert jnp.allclose(out_f32, ref_f32, atol=1e-4, rtol=1e-4), \
        float(jnp.max(jnp.abs(out_f32 - ref_f32)))

    # ---- bf16-MXU path (production config): vs. bf16-operand reference -----
    prep_bf16 = prepare_conv4layer_params(params1, params2, W, with_bn_relu,
                                          mxu_dtype=jnp.bfloat16)
    out_bf16 = jax.block_until_ready(
        conv4layer_block(x, prep_bf16, with_bn_relu, mxu_dtype=jnp.bfloat16))
    ref_bf16 = jax.block_until_ready(
        _ref_block(x, params1, params2, with_bn_relu, mxu_dtype=jnp.bfloat16))
    assert out_bf16.shape == (N, out_channels, H, W), out_bf16.shape
    assert jnp.allclose(out_bf16, ref_bf16, atol=2e-3, rtol=2e-3), \
        float(jnp.max(jnp.abs(out_bf16 - ref_bf16)))

    print("KERNEL_OK")
</pallas_src>

<mosaic_0001>
module attributes {stable_mosaic.version = 11 : i64} {
  func.func @kernel(%arg0: i32, %arg1: memref<32x128xf32, #tpu.memory_space<vmem>>, %arg2: memref<128x128xf32, #tpu.memory_space<vmem>>, %arg3: memref<1x128xf32, #tpu.memory_space<vmem>>, %arg4: memref<9x128xf32, #tpu.memory_space<vmem>>, %arg5: memref<1x128xf32, #tpu.memory_space<vmem>>, %arg6: memref<128x256xf32, #tpu.memory_space<vmem>>, %arg7: memref<1x256xf32, #tpu.memory_space<vmem>>, %arg8: memref<9x256xf32, #tpu.memory_space<vmem>>, %arg9: memref<1x256xf32, #tpu.memory_space<vmem>>, %arg10: memref<32x256xf32, #tpu.memory_space<vmem>>) attributes {dimension_semantics = [#tpu.dimension_semantics<parallel>], iteration_bounds = array<i64: 1>, scalar_prefetch = 0 : i64, scratch_operands = 0 : i64, tpu.core_type = #tpu.core_type<tc>, window_params = [{transform_indices = @transform_0, window_bounds = array<i64: 32, 128>}, {pipeline_mode = #tpu.pipeline_mode<synchronous>, transform_indices = @transform_1, window_bounds = array<i64: 128, 128>}, {pipeline_mode = #tpu.pipeline_mode<synchronous>, transform_indices = @transform_2, window_bounds = array<i64: 1, 128>}, {pipeline_mode = #tpu.pipeline_mode<synchronous>, transform_indices = @transform_3, window_bounds = array<i64: 9, 128>}, {pipeline_mode = #tpu.pipeline_mode<synchronous>, transform_indices = @transform_4, window_bounds = array<i64: 1, 128>}, {pipeline_mode = #tpu.pipeline_mode<synchronous>, transform_indices = @transform_5, window_bounds = array<i64: 128, 256>}, {pipeline_mode = #tpu.pipeline_mode<synchronous>, transform_indices = @transform_6, window_bounds = array<i64: 1, 256>}, {pipeline_mode = #tpu.pipeline_mode<synchronous>, transform_indices = @transform_7, window_bounds = array<i64: 9, 256>}, {pipeline_mode = #tpu.pipeline_mode<synchronous>, transform_indices = @transform_8, window_bounds = array<i64: 1, 256>}, {transform_indices = @transform_9, window_bounds = array<i64: 32, 256>}]} {
    %c0 = arith.constant 0 : index
    %c0_0 = arith.constant 0 : index
    %0 = vector.load %arg1[%c0, %c0_0] : memref<32x128xf32, #tpu.memory_space<vmem>>, vector<32x128xf32>
    %c0_1 = arith.constant 0 : index
    %c0_2 = arith.constant 0 : index
    %1 = vector.load %arg2[%c0_1, %c0_2] : memref<128x128xf32, #tpu.memory_space<vmem>>, vector<128x128xf32>
    %cst = arith.constant dense<0.000000e+00> : vector<32x128xf32>
    %2 = tpu.matmul %0, %1, %cst {dimension_numbers = #tpu.dot_dimension_numbers<[1], [0], [0], [1], [0, 0, 1, 1], [], []>} : vector<32x128xf32>, vector<128x128xf32>, vector<32x128xf32> -> vector<32x128xf32>
    %c0_3 = arith.constant 0 : index
    %c0_4 = arith.constant 0 : index
    %3 = vector.load %arg3[%c0_3, %c0_4] : memref<1x128xf32, #tpu.memory_space<vmem>>, vector<1x128xf32>
    %4 = vector.broadcast %3 : vector<1x128xf32> to vector<32x128xf32>
    %5 = arith.addf %2, %4 : vector<32x128xf32>
    %6 = tpu.iota {dimensions = array<i32: 1>} : vector<32x128xi32>
    %7 = tpu.iota {dimensions = array<i32: 0>} : vector<32x128xi32>
    %c16_i32 = arith.constant 16 : i32
    %c0_i32 = arith.constant 0 : i32
    %8 = arith.cmpi eq, %c16_i32, %c0_i32 : i32
    %c1_i32 = arith.constant 1 : i32
    %9 = arith.select %8, %c1_i32, %c16_i32 : i32
    %10 = vector.broadcast %9 : i32 to vector<32x128xi32>
    %11 = arith.remsi %7, %10 : vector<32x128xi32>
    %c0_i32_5 = arith.constant 0 : i32
    %12 = vector.broadcast %c0_i32_5 : i32 to vector<32x128xi32>
    %13 = arith.cmpi ne, %11, %12 : vector<32x128xi32>
    %c0_i32_6 = arith.constant 0 : i32
    %14 = vector.broadcast %c0_i32_6 : i32 to vector<32x128xi32>
    %15 = arith.cmpi slt, %11, %14 : vector<32x128xi32>
    %c0_i32_7 = arith.constant 0 : i32
    %16 = arith.cmpi slt, %9, %c0_i32_7 : i32
    %17 = vector.broadcast %16 : i1 to vector<32x128xi1>
    %18 = vector.broadcast %17 : vector<32x128xi1> to vector<32x128xi1>
    %19 = arith.xori %15, %18 : vector<32x128xi1>
    %20 = arith.andi %19, %13 : vector<32x128xi1>
    %21 = vector.broadcast %9 : i32 to vector<32x128xi32>
    %22 = arith.addi %11, %21 : vector<32x128xi32>
    %23 = arith.select %20, %22, %11 : vector<32x128xi1>, vector<32x128xi32>
    %cst_8 = arith.constant 0.000000e+00 : f32
    %24 = vector.broadcast %cst_8 : f32 to vector<32x128xf32>
    %c8_i32 = arith.constant 8 : i32
    %25 = vector.broadcast %c8_i32 : i32 to vector<32x128xi32>
    %26 = arith.cmpi sge, %6, %25 : vector<32x128xi32>
    %c8_i32_9 = arith.constant 8 : i32
    %27 = tpu.dynamic_rotate %5 by %c8_i32_9 dim 1 : vector<32x128xf32>, i32 -> vector<32x128xf32>
    %28 = arith.select %26, %27, %24 : vector<32x128xi1>, vector<32x128xf32>
    %c120_i32 = arith.constant 120 : i32
    %29 = vector.broadcast %c120_i32 : i32 to vector<32x128xi32>
    %30 = arith.cmpi slt, %6, %29 : vector<32x128xi32>
    %c120_i32_10 = arith.constant 120 : i32
    %31 = tpu.dynamic_rotate %5 by %c120_i32_10 dim 1 : vector<32x128xf32>, i32 -> vector<32x128xf32>
    %32 = arith.select %30, %31, %24 : vector<32x128xi1>, vector<32x128xf32>
    %c0_11 = arith.constant 0 : index
    %c0_12 = arith.constant 0 : index
    %33 = vector.load %arg4[%c0_11, %c0_12] : memref<9x128xf32, #tpu.memory_space<vmem>>, vector<1x128xf32>
    %34 = vector.broadcast %33 : vector<1x128xf32> to vector<32x128xf32>
    %35 = arith.mulf %28, %34 : vector<32x128xf32>
    %c1 = arith.constant 1 : index
    %c0_13 = arith.constant 0 : index
    %36 = vector.load %arg4[%c1, %c0_13] : memref<9x128xf32, #tpu.memory_space<vmem>>, vector<1x128xf32>
    %37 = vector.broadcast %36 : vector<1x128xf32> to vector<32x128xf32>
    %38 = arith.mulf %5, %37 : vector<32x128xf32>
    %39 = arith.addf %35, %38 : vector<32x128xf32>
    %c2 = arith.constant 2 : index
    %c0_14 = arith.constant 0 : index
    %40 = vector.load %arg4[%c2, %c0_14] : memref<9x128xf32, #tpu.memory_space<vmem>>, vector<1x128xf32>
    %41 = vector.broadcast %40 : vector<1x128xf32> to vector<32x128xf32>
    %42 = arith.mulf %32, %41 : vector<32x128xf32>
    %43 = arith.addf %39, %42 : vector<32x128xf32>
    %c1_i32_15 = arith.constant 1 : i32
    %44 = vector.broadcast %c1_i32_15 : i32 to vector<32x128xi32>
    %45 = arith.cmpi sge, %23, %44 : vector<32x128xi32>
    %c1_i32_16 = arith.constant 1 : i32
    %46 = tpu.dynamic_rotate %43 by %c1_i32_16 dim 0 : vector<32x128xf32>, i32 -> vector<32x128xf32>
    %47 = arith.select %45, %46, %24 : vector<32x128xi1>, vector<32x128xf32>
    %c3 = arith.constant 3 : index
    %c0_17 = arith.constant 0 : index
    %48 = vector.load %arg4[%c3, %c0_17] : memref<9x128xf32, #tpu.memory_space<vmem>>, vector<1x128xf32>
    %49 = vector.broadcast %48 : vector<1x128xf32> to vector<32x128xf32>
    %50 = arith.mulf %28, %49 : vector<32x128xf32>
    %c4 = arith.constant 4 : index
    %c0_18 = arith.constant 0 : index
    %51 = vector.load %arg4[%c4, %c0_18] : memref<9x128xf32, #tpu.memory_space<vmem>>, vector<1x128xf32>
    %52 = vector.broadcast %51 : vector<1x128xf32> to vector<32x128xf32>
    %53 = arith.mulf %5, %52 : vector<32x128xf32>
    %54 = arith.addf %50, %53 : vector<32x128xf32>
    %c5 = arith.constant 5 : index
    %c0_19 = arith.constant 0 : index
    %55 = vector.load %arg4[%c5, %c0_19] : memref<9x128xf32, #tpu.memory_space<vmem>>, vector<1x128xf32>
    %56 = vector.broadcast %55 : vector<1x128xf32> to vector<32x128xf32>
    %57 = arith.mulf %32, %56 : vector<32x128xf32>
    %58 = arith.addf %54, %57 : vector<32x128xf32>
    %59 = arith.addf %47, %58 : vector<32x128xf32>
    %c6 = arith.constant 6 : index
    %c0_20 = arith.constant 0 : index
    %60 = vector.load %arg4[%c6, %c0_20] : memref<9x128xf32, #tpu.memory_space<vmem>>, vector<1x128xf32>
    %61 = vector.broadcast %60 : vector<1x128xf32> to vector<32x128xf32>
    %62 = arith.mulf %28, %61 : vector<32x128xf32>
    %c7 = arith.constant 7 : index
    %c0_21 = arith.constant 0 : index
    %63 = vector.load %arg4[%c7, %c0_21] : memref<9x128xf32, #tpu.memory_space<vmem>>, vector<1x128xf32>
    %64 = vector.broadcast %63 : vector<1x128xf32> to vector<32x128xf32>
    %65 = arith.mulf %5, %64 : vector<32x128xf32>
    %66 = arith.addf %62, %65 : vector<32x128xf32>
    %c8 = arith.constant 8 : index
    %c0_22 = arith.constant 0 : index
    %67 = vector.load %arg4[%c8, %c0_22] : memref<9x128xf32, #tpu.memory_space<vmem>>, vector<1x128xf32>
    %68 = vector.broadcast %67 : vector<1x128xf32> to vector<32x128xf32>
    %69 = arith.mulf %32, %68 : vector<32x128xf32>
    %70 = arith.addf %66, %69 : vector<32x128xf32>
    %c14_i32 = arith.constant 14 : i32
    %71 = vector.broadcast %c14_i32 : i32 to vector<32x128xi32>
    %72 = arith.cmpi sle, %23, %71 : vector<32x128xi32>
    %c31_i32 = arith.constant 31 : i32
    %73 = tpu.dynamic_rotate %70 by %c31_i32 dim 0 : vector<32x128xf32>, i32 -> vector<32x128xf32>
    %74 = arith.select %72, %73, %24 : vector<32x128xi1>, vector<32x128xf32>
    %75 = arith.addf %59, %74 : vector<32x128xf32>
    %c0_23 = arith.constant 0 : index
    %c0_24 = arith.constant 0 : index
    %76 = vector.load %arg5[%c0_23, %c0_24] : memref<1x128xf32, #tpu.memory_space<vmem>>, vector<1x128xf32>
    %77 = vector.broadcast %76 : vector<1x128xf32> to vector<32x128xf32>
    %78 = arith.addf %75, %77 : vector<32x128xf32>
    %cst_25 = arith.constant 0.000000e+00 : f32
    %79 = vector.broadcast %cst_25 : f32 to vector<32x128xf32>
    %80 = arith.maximumf %78, %79 : vector<32x128xf32>
    %c0_26 = arith.constant 0 : index
    %c0_27 = arith.constant 0 : index
    %81 = vector.load %arg6[%c0_26, %c0_27] : memref<128x256xf32, #tpu.memory_space<vmem>>, vector<128x256xf32>
    %cst_28 = arith.constant dense<0.000000e+00> : vector<32x256xf32>
    %82 = tpu.matmul %80, %81, %cst_28 {dimension_numbers = #tpu.dot_dimension_numbers<[1], [0], [0], [1], [0, 0, 1, 1], [], []>} : vector<32x128xf32>, vector<128x256xf32>, vector<32x256xf32> -> vector<32x256xf32>
    %c0_29 = arith.constant 0 : index
    %c0_30 = arith.constant 0 : index
    %83 = vector.load %arg7[%c0_29, %c0_30] : memref<1x256xf32, #tpu.memory_space<vmem>>, vector<1x256xf32>
    %84 = vector.broadcast %83 : vector<1x256xf32> to vector<32x256xf32>
    %85 = arith.addf %82, %84 : vector<32x256xf32>
    %86 = tpu.iota {dimensions = array<i32: 1>} : vector<32x256xi32>
    %87 = tpu.iota {dimensions = array<i32: 0>} : vector<32x256xi32>
    %c16_i32_31 = arith.constant 16 : i32
    %c0_i32_32 = arith.constant 0 : i32
    %88 = arith.cmpi eq, %c16_i32_31, %c0_i32_32 : i32
    %c1_i32_33 = arith.constant 1 : i32
    %89 = arith.select %88, %c1_i32_33, %c16_i32_31 : i32
    %90 = vector.broadcast %89 : i32 to vector<32x256xi32>
    %91 = arith.remsi %87, %90 : vector<32x256xi32>
    %c0_i32_34 = arith.constant 0 : i32
    %92 = vector.broadcast %c0_i32_34 : i32 to vector<32x256xi32>
    %93 = arith.cmpi ne, %91, %92 : vector<32x256xi32>
    %c0_i32_35 = arith.constant 0 : i32
    %94 = vector.broadcast %c0_i32_35 : i32 to vector<32x256xi32>
    %95 = arith.cmpi slt, %91, %94 : vector<32x256xi32>
    %c0_i32_36 = arith.constant 0 : i32
    %96 = arith.cmpi slt, %89, %c0_i32_36 : i32
    %97 = vector.broadcast %96 : i1 to vector<32x256xi1>
    %98 = vector.broadcast %97 : vector<32x256xi1> to vector<32x256xi1>
    %99 = arith.xori %95, %98 : vector<32x256xi1>
    %100 = arith.andi %99, %93 : vector<32x256xi1>
    %101 = vector.broadcast %89 : i32 to vector<32x256xi32>
    %102 = arith.addi %91, %101 : vector<32x256xi32>
    %103 = arith.select %100, %102, %91 : vector<32x256xi1>, vector<32x256xi32>
    %cst_37 = arith.constant 0.000000e+00 : f32
    %104 = vector.broadcast %cst_37 : f32 to vector<32x256xf32>
    %c16_i32_38 = arith.constant 16 : i32
    %105 = vector.broadcast %c16_i32_38 : i32 to vector<32x256xi32>
    %106 = arith.cmpi sge, %86, %105 : vector<32x256xi32>
    %c16_i32_39 = arith.constant 16 : i32
    %107 = tpu.dynamic_rotate %85 by %c16_i32_39 dim 1 : vector<32x256xf32>, i32 -> vector<32x256xf32>
    %108 = arith.select %106, %107, %104 : vector<32x256xi1>, vector<32x256xf32>
    %c240_i32 = arith.constant 240 : i32
    %109 = vector.broadcast %c240_i32 : i32 to vector<32x256xi32>
    %110 = arith.cmpi slt, %86, %109 : vector<32x256xi32>
    %c240_i32_40 = arith.constant 240 : i32
    %111 = tpu.dynamic_rotate %85 by %c240_i32_40 dim 1 : vector<32x256xf32>, i32 -> vector<32x256xf32>
    %112 = arith.select %110, %111, %104 : vector<32x256xi1>, vector<32x256xf32>
    %c0_41 = arith.constant 0 : index
    %c0_42 = arith.constant 0 : index
    %113 = vector.load %arg8[%c0_41, %c0_42] : memref<9x256xf32, #tpu.memory_space<vmem>>, vector<1x256xf32>
    %114 = vector.broadcast %113 : vector<1x256xf32> to vector<32x256xf32>
    %115 = arith.mulf %108, %114 : vector<32x256xf32>
    %c1_43 = arith.constant 1 : index
    %c0_44 = arith.constant 0 : index
    %116 = vector.load %arg8[%c1_43, %c0_44] : memref<9x256xf32, #tpu.memory_space<vmem>>, vector<1x256xf32>
    %117 = vector.broadcast %116 : vector<1x256xf32> to vector<32x256xf32>
    %118 = arith.mulf %85, %117 : vector<32x256xf32>
    %119 = arith.addf %115, %118 : vector<32x256xf32>
    %c2_45 = arith.constant 2 : index
    %c0_46 = arith.constant 0 : index
    %120 = vector.load %arg8[%c2_45, %c0_46] : memref<9x256xf32, #tpu.memory_space<vmem>>, vector<1x256xf32>
    %121 = vector.broadcast %120 : vector<1x256xf32> to vector<32x256xf32>
    %122 = arith.mulf %112, %121 : vector<32x256xf32>
    %123 = arith.addf %119, %122 : vector<32x256xf32>
    %c1_i32_47 = arith.constant 1 : i32
    %124 = vector.broadcast %c1_i32_47 : i32 to vector<32x256xi32>
    %125 = arith.cmpi sge, %103, %124 : vector<32x256xi32>
    %c1_i32_48 = arith.constant 1 : i32
    %126 = tpu.dynamic_rotate %123 by %c1_i32_48 dim 0 : vector<32x256xf32>, i32 -> vector<32x256xf32>
    %127 = arith.select %125, %126, %104 : vector<32x256xi1>, vector<32x256xf32>
    %c3_49 = arith.constant 3 : index
    %c0_50 = arith.constant 0 : index
    %128 = vector.load %arg8[%c3_49, %c0_50] : memref<9x256xf32, #tpu.memory_space<vmem>>, vector<1x256xf32>
    %129 = vector.broadcast %128 : vector<1x256xf32> to vector<32x256xf32>
    %130 = arith.mulf %108, %129 : vector<32x256xf32>
    %c4_51 = arith.constant 4 : index
    %c0_52 = arith.constant 0 : index
    %131 = vector.load %arg8[%c4_51, %c0_52] : memref<9x256xf32, #tpu.memory_space<vmem>>, vector<1x256xf32>
    %132 = vector.broadcast %131 : vector<1x256xf32> to vector<32x256xf32>
    %133 = arith.mulf %85, %132 : vector<32x256xf32>
    %134 = arith.addf %130, %133 : vector<32x256xf32>
    %c5_53 = arith.constant 5 : index
    %c0_54 = arith.constant 0 : index
    %135 = vector.load %arg8[%c5_53, %c0_54] : memref<9x256xf32, #tpu.memory_space<vmem>>, vector<1x256xf32>
    %136 = vector.broadcast %135 : vector<1x256xf32> to vector<32x256xf32>
    %137 = arith.mulf %112, %136 : vector<32x256xf32>
    %138 = arith.addf %134, %137 : vector<32x256xf32>
    %139 = arith.addf %127, %138 : vector<32x256xf32>
    %c6_55 = arith.constant 6 : index
    %c0_56 = arith.constant 0 : index
    %140 = vector.load %arg8[%c6_55, %c0_56] : memref<9x256xf32, #tpu.memory_space<vmem>>, vector<1x256xf32>
    %141 = vector.broadcast %140 : vector<1x256xf32> to vector<32x256xf32>
    %142 = arith.mulf %108, %141 : vector<32x256xf32>
    %c7_57 = arith.constant 7 : index
    %c0_58 = arith.constant 0 : index
    %143 = vector.load %arg8[%c7_57, %c0_58] : memref<9x256xf32, #tpu.memory_space<vmem>>, vector<1x256xf32>
    %144 = vector.broadcast %143 : vector<1x256xf32> to vector<32x256xf32>
    %145 = arith.mulf %85, %144 : vector<32x256xf32>
    %146 = arith.addf %142, %145 : vector<32x256xf32>
    %c8_59 = arith.constant 8 : index
    %c0_60 = arith.constant 0 : index
    %147 = vector.load %arg8[%c8_59, %c0_60] : memref<9x256xf32, #tpu.memory_space<vmem>>, vector<1x256xf32>
    %148 = vector.broadcast %147 : vector<1x256xf32> to vector<32x256xf32>
    %149 = arith.mulf %112, %148 : vector<32x256xf32>
    %150 = arith.addf %146, %149 : vector<32x256xf32>
    %c14_i32_61 = arith.constant 14 : i32
    %151 = vector.broadcast %c14_i32_61 : i32 to vector<32x256xi32>
    %152 = arith.cmpi sle, %103, %151 : vector<32x256xi32>
    %c31_i32_62 = arith.constant 31 : i32
    %153 = tpu.dynamic_rotate %150 by %c31_i32_62 dim 0 : vector<32x256xf32>, i32 -> vector<32x256xf32>
    %154 = arith.select %152, %153, %104 : vector<32x256xi1>, vector<32x256xf32>
    %155 = arith.addf %139, %154 : vector<32x256xf32>
    %c0_63 = arith.constant 0 : index
    %c0_64 = arith.constant 0 : index
    %156 = vector.load %arg9[%c0_63, %c0_64] : memref<1x256xf32, #tpu.memory_space<vmem>>, vector<1x256xf32>
    %157 = vector.broadcast %156 : vector<1x256xf32> to vector<32x256xf32>
    %158 = arith.addf %155, %157 : vector<32x256xf32>
    %cst_65 = arith.constant 0.000000e+00 : f32
    %159 = vector.broadcast %cst_65 : f32 to vector<32x256xf32>
    %160 = arith.maximumf %158, %159 : vector<32x256xf32>
    %c0_66 = arith.constant 0 : index
    %c0_67 = arith.constant 0 : index
    %161 = vector.load %arg10[%c0_66, %c0_67] : memref<32x256xf32, #tpu.memory_space<vmem>>, vector<32x256xf32>
    tpu.vector_store %arg10[%c0_66, %c0_67], %160 {strides = array<i32>} : memref<32x256xf32, #tpu.memory_space<vmem>>, vector<32x256xf32>,
    return
  }
  func.func @transform_0(%arg0: i32) -> (i32, i32) {
    %c0_i32 = arith.constant 0 : i32
    %c0_i32_0 = arith.constant 0 : i32
    return %arg0, %c0_i32 : i32, i32
  }
  func.func @transform_1(%arg0: i32) -> (i32, i32) {
    %c0_i32 = arith.constant 0 : i32
    %c0_i32_0 = arith.constant 0 : i32
    %c0_i32_1 = arith.constant 0 : i32
    return %c0_i32, %c0_i32_0 : i32, i32
  }
  func.func @transform_2(%arg0: i32) -> (i32, i32) {
    %c0_i32 = arith.constant 0 : i32
    %c0_i32_0 = arith.constant 0 : i32
    %c0_i32_1 = arith.constant 0 : i32
    return %c0_i32, %c0_i32_0 : i32, i32
  }
  func.func @transform_3(%arg0: i32) -> (i32, i32) {
    %c0_i32 = arith.constant 0 : i32
    %c0_i32_0 = arith.constant 0 : i32
    %c0_i32_1 = arith.constant 0 : i32
    return %c0_i32, %c0_i32_0 : i32, i32
  }
  func.func @transform_4(%arg0: i32) -> (i32, i32) {
    %c0_i32 = arith.constant 0 : i32
    %c0_i32_0 = arith.constant 0 : i32
    %c0_i32_1 = arith.constant 0 : i32
    return %c0_i32, %c0_i32_0 : i32, i32
  }
  func.func @transform_5(%arg0: i32) -> (i32, i32) {
    %c0_i32 = arith.constant 0 : i32
    %c0_i32_0 = arith.constant 0 : i32
    %c0_i32_1 = arith.constant 0 : i32
    return %c0_i32, %c0_i32_0 : i32, i32
  }
  func.func @transform_6(%arg0: i32) -> (i32, i32) {
    %c0_i32 = arith.constant 0 : i32
    %c0_i32_0 = arith.constant 0 : i32
    %c0_i32_1 = arith.constant 0 : i32
    return %c0_i32, %c0_i32_0 : i32, i32
  }
  func.func @transform_7(%arg0: i32) -> (i32, i32) {
    %c0_i32 = arith.constant 0 : i32
    %c0_i32_0 = arith.constant 0 : i32
    %c0_i32_1 = arith.constant 0 : i32
    return %c0_i32, %c0_i32_0 : i32, i32
  }
  func.func @transform_8(%arg0: i32) -> (i32, i32) {
    %c0_i32 = arith.constant 0 : i32
    %c0_i32_0 = arith.constant 0 : i32
    %c0_i32_1 = arith.constant 0 : i32
    return %c0_i32, %c0_i32_0 : i32, i32
  }
  func.func @transform_9(%arg0: i32) -> (i32, i32) {
    %c0_i32 = arith.constant 0 : i32
    %c0_i32_0 = arith.constant 0 : i32
    return %arg0, %c0_i32 : i32, i32
  }
}

</mosaic_0001>

<llo_original>
// kernel: tpu_custom_call.1
$region0: #{tpu_custom_call.1}
  #allocation0 [shape = 'u32[]', space=smem, size = 0x4, offset = 0x4, fixed_abs, tag = 'smem constant byte address 0x4 - core index']
  #allocation1 [shape = 'u32[144,128]{1,0:T(1,128)}', space=vmem, size = 0x12000, scoped, tag = 'internal scratch']
  %s0 = inlined_call_operand.hbm [shape: f32[32,128], index: 0, kind: input, shape index: {}]
  %s1 = inlined_call_operand.hbm [shape: f32[128,128], index: 1, kind: input, shape index: {}]
  %s2 = inlined_call_operand.vmem [shape: f32[1,128], index: 2, kind: input, shape index: {}]
  %s3 = inlined_call_operand.hbm [shape: f32[9,128], index: 3, kind: input, shape index: {}]
  %s4 = inlined_call_operand.vmem [shape: f32[1,128], index: 4, kind: input, shape index: {}]
  %s5 = inlined_call_operand.hbm [shape: f32[128,256], index: 5, kind: input, shape index: {}]
  %s6 = inlined_call_operand.vmem [shape: f32[1,256], index: 6, kind: input, shape index: {}]
  %s7 = inlined_call_operand.hbm [shape: f32[9,256], index: 7, kind: input, shape index: {}]
  %s8 = inlined_call_operand.vmem [shape: f32[1,256], index: 8, kind: input, shape index: {}]
  %s9 = inlined_call_operand.hbm [shape: f32[32,256], index: 9, kind: output, shape index: {}]
  %s10 = sld [smem:[#allocation0]]
  $region66: #{tpu_custom_call.1} parent=0
    _
  %s12 = ssub.s32 1, %s10
  %s13 = scalar_select 0, %s12, %s10
  $region1: #{tpu_custom_call.1} parent=0
    #allocation2 [shape = 'u8[16384]{0}', space=vmem, size = 0x4000, scoped, tag = 'input window, operand 0, single buffered']
    #allocation3 [shape = 's32[1]{0}', space=sflag, size = 0x4, scoped, tag = 'scoped memory for tpu_custom_call.1']
    #allocation4 [shape = 's32[1]{0}', space=sflag, size = 0x4, scoped, tag = 'scoped memory for tpu_custom_call.1']
    #allocation5 [shape = 'u8[65536]{0}', space=vmem, size = 0x10000, scoped, tag = 'input window, operand 1, single buffered']
    #allocation6 [shape = 's32[1]{0}', space=sflag, size = 0x4, scoped, tag = 'scoped memory for tpu_custom_call.1']
    #allocation7 [shape = 'u8[8192]{0}', space=vmem, size = 0x2000, scoped, tag = 'input window, operand 3, single buffered']
    #allocation8 [shape = 'u8[131072]{0}', space=vmem, size = 0x20000, scoped, tag = 'input window, operand 5, single buffered']
    #allocation9 [shape = 's32[1]{0}', space=sflag, size = 0x4, scoped, tag = 'scoped memory for tpu_custom_call.1']
    #allocation10 [shape = 'u8[16384]{0}', space=vmem, size = 0x4000, scoped, tag = 'input window, operand 7, single buffered']
    #allocation11 [shape = 'u8[32768]{0}', space=vmem, size = 0x8000, scoped, tag = 'output window, operand 0, single buffered']
    %14 = vsyncpa [#allocation3], 0
    %15 = vsyncpa [#allocation6], 0
    %16 = vsyncpa [#allocation9], 0
    %17 = vsyncpa [#allocation4], 0
    // Predicated region
    $region2: #{tpu_custom_call.1} parent=1 // pred_check
      _
    $region3: #{tpu_custom_call.1} parent=1 // pred_check_branch
      %19 = sbr.rel (0) target = $region5
    $region4: #{tpu_custom_call.1} parent=1 // pred_region
      %s21 = ssub.s32 512, 512
      %22 = vsyncadd [#allocation3], %s21
      %s23 = sshll.u32 [#allocation2], 4
      %s24 = int_to_ptr.vmem [resolvable:$true] %s23
      %29 = dma.hbm_to_vmem [thread:$0]  %s0, 512, %s24, [#allocation3], 128, 128, 8
    $region5: #{tpu_custom_call.1} parent=1 // pred_fallthru
      _
    // Predicated region
    $region6: #{tpu_custom_call.1} parent=1 // pred_check
      _
    $region7: #{tpu_custom_call.1} parent=1 // pred_check_branch
      %31 = sbr.rel (0) target = $region9
    $region8: #{tpu_custom_call.1} parent=1 // pred_region
      %s33 = ssub.s32 2048, 2048
      %34 = vsyncadd [#allocation6], %s33
      %s35 = sshll.u32 [#allocation5], 4
      %s36 = int_to_ptr.vmem [resolvable:$true] %s35
      %41 = dma.hbm_to_vmem [thread:$0]  %s1, 2048, %s36, [#allocation6], 128, 128, 8
    $region9: #{tpu_custom_call.1} parent=1 // pred_fallthru
      _
    // Predicated region
    $region10: #{tpu_custom_call.1} parent=1 // pred_check
      _
    $region11: #{tpu_custom_call.1} parent=1 // pred_check_branch
      %43 = sbr.rel (0) target = $region13
    $region12: #{tpu_custom_call.1} parent=1 // pred_region
      _
    $region13: #{tpu_custom_call.1} parent=1 // pred_fallthru
      _
    // Predicated region
    $region14: #{tpu_custom_call.1} parent=1 // pred_check
      _
    $region15: #{tpu_custom_call.1} parent=1 // pred_check_branch
      %45 = sbr.rel (0) target = $region17
    $region16: #{tpu_custom_call.1} parent=1 // pred_region
      %s47 = ssub.s32 256, 256
      %48 = vsyncadd [#allocation6], %s47
      %s49 = sshll.u32 [#allocation7], 4
      %s50 = int_to_ptr.vmem [resolvable:$true] %s49
      %55 = dma.hbm_to_vmem [thread:$0]  %s3, 256, %s50, [#allocation6], 128, 128, 8
    $region17: #{tpu_custom_call.1} parent=1 // pred_fallthru
      _
    // Predicated region
    $region18: #{tpu_custom_call.1} parent=1 // pred_check
      _
    $region19: #{tpu_custom_call.1} parent=1 // pred_check_branch
      %57 = sbr.rel (0) target = $region21
    $region20: #{tpu_custom_call.1} parent=1 // pred_region
      _
    $region21: #{tpu_custom_call.1} parent=1 // pred_fallthru
      _
    // Predicated region
    $region22: #{tpu_custom_call.1} parent=1 // pred_check
      _
    $region23: #{tpu_custom_call.1} parent=1 // pred_check_branch
      %59 = sbr.rel (0) target = $region25
    $region24: #{tpu_custom_call.1} parent=1 // pred_region
      %s61 = ssub.s32 4096, 4096
      %62 = vsyncadd [#allocation9], %s61
      %s63 = sshll.u32 [#allocation8], 4
      %s64 = int_to_ptr.vmem [resolvable:$true] %s63
      %69 = dma.hbm_to_vmem [thread:$0]  %s5, 4096, %s64, [#allocation9], 256, 256, 16
    $region25: #{tpu_custom_call.1} parent=1 // pred_fallthru
      _
    // Predicated region
    $region26: #{tpu_custom_call.1} parent=1 // pred_check
      _
    $region27: #{tpu_custom_call.1} parent=1 // pred_check_branch
      %71 = sbr.rel (0) target = $region29
    $region28: #{tpu_custom_call.1} parent=1 // pred_region
      _
    $region29: #{tpu_custom_call.1} parent=1 // pred_fallthru
      _
    // Predicated region
    $region30: #{tpu_custom_call.1} parent=1 // pred_check
      _
    $region31: #{tpu_custom_call.1} parent=1 // pred_check_branch
      %73 = sbr.rel (0) target = $region33
    $region32: #{tpu_custom_call.1} parent=1 // pred_region
      %s75 = ssub.s32 512, 512
      %76 = vsyncadd [#allocation9], %s75
      %s77 = sshll.u32 [#allocation10], 4
      %s78 = int_to_ptr.vmem [resolvable:$true] %s77
      %83 = dma.hbm_to_vmem [thread:$0]  %s7, 512, %s78, [#allocation9], 256, 256, 16
    $region33: #{tpu_custom_call.1} parent=1 // pred_fallthru
      _
    // Predicated region
    $region34: #{tpu_custom_call.1} parent=1 // pred_check
      _
    $region35: #{tpu_custom_call.1} parent=1 // pred_check_branch
      %85 = sbr.rel (0) target = $region37
    $region36: #{tpu_custom_call.1} parent=1 // pred_region
      _
    $region37: #{tpu_custom_call.1} parent=1 // pred_fallthru
      _
    // Predicated region
    $region38: #{tpu_custom_call.1} parent=1 // pred_check
      _
    $region39: #{tpu_custom_call.1} parent=1 // pred_check_branch
      %87 = sbr.rel (0) target = $region41
    $region40: #{tpu_custom_call.1} parent=1 // pred_region
      %88 = dma.done [#allocation3], 512
    $region41: #{tpu_custom_call.1} parent=1 // pred_fallthru
      _
    // Predicated region
    $region42: #{tpu_custom_call.1} parent=1 // pred_check
      _
    $region43: #{tpu_custom_call.1} parent=1 // pred_check_branch
      %90 = sbr.rel (0) target = $region45
    $region44: #{tpu_custom_call.1} parent=1 // pred_region
      %91 = dma.done [#allocation6], 2048
    $region45: #{tpu_custom_call.1} parent=1 // pred_fallthru
      _
    // Predicated region
    $region46: #{tpu_custom_call.1} parent=1 // pred_check
      _
    $region47: #{tpu_custom_call.1} parent=1 // pred_check_branch
      %93 = sbr.rel (0) target = $region49
    $region48: #{tpu_custom_call.1} parent=1 // pred_region
      %94 = dma.done [#allocation6], 256
    $region49: #{tpu_custom_call.1} parent=1 // pred_fallthru
      _
    // Predicated region
    $region50: #{tpu_custom_call.1} parent=1 // pred_check
      _
    $region51: #{tpu_custom_call.1} parent=1 // pred_check_branch
      %96 = sbr.rel (0) target = $region53
    $region52: #{tpu_custom_call.1} parent=1 // pred_region
      %97 = dma.done [#allocation9], 4096
    $region53: #{tpu_custom_call.1} parent=1 // pred_fallthru
      _
    // Predicated region
    $region54: #{tpu_custom_call.1} parent=1 // pred_check
      _
    $region55: #{tpu_custom_call.1} parent=1 // pred_check_branch
      %99 = sbr.rel (0) target = $region57
    $region56: #{tpu_custom_call.1} parent=1 // pred_region
      %100 = dma.done [#allocation9], 512
    $region57: #{tpu_custom_call.1} parent=1 // pred_fallthru
      _
    %v101 = vld [vmem:[#allocation2] sm:$0xff]
    %v102 = vld [vmem:[#allocation2 + $0x8] sm:$0xff]
    %v103 = vld [vmem:[#allocation2 + $0x10] sm:$0xff]
    %v104 = vld [vmem:[#allocation2 + $0x18] sm:$0xff]
    %v105 = vld [vmem:[#allocation5] sm:$0xff]
    %v106 = vld [vmem:[#allocation5 + $0x8] sm:$0xff]
    %v107 = vld [vmem:[#allocation5 + $0x10] sm:$0xff]
    %v108 = vld [vmem:[#allocation5 + $0x18] sm:$0xff]
    %v109 = vld [vmem:[#allocation5 + $0x20] sm:$0xff]
    %v110 = vld [vmem:[#allocation5 + $0x28] sm:$0xff]
    %v111 = vld [vmem:[#allocation5 + $0x30] sm:$0xff]
    %v112 = vld [vmem:[#allocation5 + $0x38] sm:$0xff]
    %v113 = vld [vmem:[#allocation5 + $0x40] sm:$0xff]
    %v114 = vld [vmem:[#allocation5 + $0x48] sm:$0xff]
    %v115 = vld [vmem:[#allocation5 + $0x50] sm:$0xff]
    %v116 = vld [vmem:[#allocation5 + $0x58] sm:$0xff]
    %v117 = vld [vmem:[#allocation5 + $0x60] sm:$0xff]
    %v118 = vld [vmem:[#allocation5 + $0x68] sm:$0xff]
    %v119 = vld [vmem:[#allocation5 + $0x70] sm:$0xff]
    %v120 = vld [vmem:[#allocation5 + $0x78] sm:$0xff]
    %v121 = vld [vmem:[%s2] sm:$0x1]
    %v123 = vlaneseq
    %v124 = vshrl.u32 %v123, 7
    %v125 = vsub.s32 0, %v124
    %v126 = vrot.slane %v121, %v125
    %128 = vmatprep.subr.mxu0 0.0
    %129 = vmatpush1.msra.mxu0 %v120
    %130 = vmatprep.subr.mxu0 0.0
    %131 = vmatpush1.msra.mxu0 %v119
    %132 = vmatprep.subr.mxu0 0.0
    %133 = vmatpush1.msra.mxu0 %v118
    %134 = vmatprep.subr.mxu0 0.0
    %135 = vmatpush1.msra.mxu0 %v117
    %136 = vmatprep.subr.mxu0 0.0
    %137 = vmatpush1.msra.mxu0 %v116
    %138 = vmatprep.subr.mxu0 0.0
    %139 = vmatpush1.msra.mxu0 %v115
    %140 = vmatprep.subr.mxu0 0.0
    %141 = vmatpush1.msra.mxu0 %v114
    %142 = vmatprep.subr.mxu0 0.0
    %143 = vmatpush1.msra.mxu0 %v113
    %144 = vmatprep.subr.mxu0 0.0
    %145 = vmatpush1.msra.mxu0 %v112
    %146 = vmatprep.subr.mxu0 0.0
    %147 = vmatpush1.msra.mxu0 %v111
    %148 = vmatprep.subr.mxu0 0.0
    %149 = vmatpush1.msra.mxu0 %v110
    %150 = vmatprep.subr.mxu0 0.0
    %151 = vmatpush1.msra.mxu0 %v109
    %152 = vmatprep.subr.mxu0 0.0
    %153 = vmatpush1.msra.mxu0 %v108
    %154 = vmatprep.subr.mxu0 0.0
    %155 = vmatpush1.msra.mxu0 %v107
    %156 = vmatprep.subr.mxu0 0.0
    %157 = vmatpush1.msra.mxu0 %v106
    %158 = vmatprep.subr.mxu0 0.0
    %159 = vmatpush1.msra.mxu0 %v105
    %160 = vmatprep.subr.mxu0 0.0
    %161 = vmatpush2.msra.mxu0 0.0
    %162 = vmatprep.subr.mxu0 0.0
    %163 = vmatpush2.msra.mxu0 0.0
    %164 = vmatprep.subr.mxu0 0.0
    %165 = vmatpush2.msra.mxu0 0.0
    %166 = vmatprep.subr.mxu0 0.0
    %167 = vmatpush2.msra.mxu0 0.0
    %168 = vmatprep.subr.mxu0 0.0
    %169 = vmatpush2.msra.mxu0 0.0
    %170 = vmatprep.subr.mxu0 0.0
    %171 = vmatpush2.msra.mxu0 0.0
    %172 = vmatprep.subr.mxu0 0.0
    %173 = vmatpush2.msra.mxu0 0.0
    %174 = vmatprep.subr.mxu0 0.0
    %175 = vmatpush2.msra.mxu0 0.0
    %176 = vmatprep.subr.mxu0 0.0
    %177 = vmatpush2.msra.mxu0 0.0
    %178 = vmatprep.subr.mxu0 0.0
    %179 = vmatpush2.msra.mxu0 0.0
    %180 = vmatprep.subr.mxu0 0.0
    %181 = vmatpush2.msra.mxu0 0.0
    %182 = vmatprep.subr.mxu0 0.0
    %183 = vmatpush2.msra.mxu0 0.0
    %184 = vmatprep.subr.mxu0 0.0
    %185 = vmatpush2.msra.mxu0 0.0
    %186 = vmatprep.subr.mxu0 0.0
    %187 = vmatpush2.msra.mxu0 0.0
    %188 = vmatprep.subr.mxu0 0.0
    %189 = vmatpush2.msra.mxu0 0.0
    %190 = vmatprep.subr.mxu0 0.0
    %191 = vmatpush2.msra.mxu0 0.0
    %192 = vmatprep.mubr.f32.mxu0 0.0
    %193 = vmatmul.mubr.f32.gmra.mxu0 %v101
    %v194 = vpop.f32.mrf.mxu0
    %v195 = vadd.f32 %v126, %v194
    %v196 = vpop.f32.mrf.mxu0
    %197 = vmatprep.mubr.f32.mxu0 0.0
    %198 = vmatmul.mubr.f32.gmra.mxu0 %v102
    %v199 = vpop.f32.mrf.mxu0
    %v200 = vadd.f32 %v126, %v199
    %v201 = vpop.f32.mrf.mxu0
    %202 = vmatprep.mubr.f32.mxu0 0.0
    %203 = vmatmul.mubr.f32.gmra.mxu0 %v103
    %v204 = vpop.f32.mrf.mxu0
    %v205 = vadd.f32 %v126, %v204
    %v206 = vpop.f32.mrf.mxu0
    %207 = vmatprep.mubr.f32.mxu0 0.0
    %208 = vmatmul.mubr.f32.gmra.mxu0 %v104
    %v209 = vpop.f32.mrf.mxu0
    %v210 = vadd.f32 %v126, %v209
    %v211 = vpop.f32.mrf.mxu0
    %212 = vdwg.mxu0
    %v213 = vlaneseq
    %v214 = vand.u32 %v213, 127
    %v215 = vlaneseq
    %v216 = vshrl.u32 %v215, 7
    %v217 = vadd.s32 %v216, 8
    %v218 = vadd.s32 %v216, 16
    %v219 = vadd.s32 %v216, 24
    %vm220 = vcmp.lt.s32.totalorder %v216, 0
    %v221 = vsub.s32 0, %v216
    %v222 = vsel %vm220, %v221, %v216
    %v223 = vshrl.u32 %v222, 4
    %v224 = vand.u32 %v222, 15
    %v225 = vsub.s32 0, %v224
    %v226 = vsel %vm220, %v225, %v224
    %vm227 = vcmp.lt.s32.totalorder %v217, 0
    %v228 = vsub.s32 0, %v217
    %v229 = vsel %vm227, %v228, %v217
    %v230 = vshrl.u32 %v229, 4
    %v231 = vand.u32 %v229, 15
    %v232 = vsub.s32 0, %v231
    %v233 = vsel %vm227, %v232, %v231
    %vm234 = vcmp.lt.s32.totalorder %v218, 0
    %v235 = vsub.s32 0, %v218
    %v236 = vsel %vm234, %v235, %v218
    %v237 = vshrl.u32 %v236, 4
    %v238 = vand.u32 %v236, 15
    %v239 = vsub.s32 0, %v238
    %v240 = vsel %vm234, %v239, %v238
    %vm241 = vcmp.lt.s32.totalorder %v219, 0
    %v242 = vsub.s32 0, %v219
    %v243 = vsel %vm241, %v242, %v219
    %v244 = vshrl.u32 %v243, 4
    %v245 = vand.u32 %v243, 15
    %v246 = vsub.s32 0, %v245
    %v247 = vsel %vm241, %v246, %v245
    %vm248 = vcmp.ne.s32.totalorder %v226, 0
    %vm249 = vcmp.ne.s32.totalorder %v233, 0
    %vm250 = vcmp.ne.s32.totalorder %v240, 0
    %vm251 = vcmp.ne.s32.totalorder %v247, 0
    %vm252 = vcmp.lt.s32.totalorder %v226, 0
    %vm253 = vcmp.lt.s32.totalorder %v233, 0
    %vm254 = vcmp.lt.s32.totalorder %v240, 0
    %vm255 = vcmp.lt.s32.totalorder %v247, 0
    %vm256 = vmand %vm252, %vm248
    %vm257 = vmand %vm253, %vm249
    %vm258 = vmand %vm254, %vm250
    %vm259 = vmand %vm255, %vm251
    %v260 = vadd.s32 %v226, 16
    %v261 = vadd.s32 %v233, 16
    %v262 = vadd.s32 %v240, 16
    %v263 = vadd.s32 %v247, 16
    %v264 = vsel %vm256, %v260, %v226
    %v265 = vsel %vm257, %v261, %v233
    %v266 = vsel %vm258, %v262, %v240
    %v267 = vsel %vm259, %v263, %v247
    %vm268 = vcmp.ge.s32.totalorder %v214, 8
    %269 = vrot.lane.b32.xlu0 %v195, 8
    %v270 = vpop.permute.xlu0 %269
    %271 = vrot.lane.b32.xlu0 %v200, 8
    %v272 = vpop.permute.xlu0 %271
    %273 = vrot.lane.b32.xlu0 %v205, 8
    %v274 = vpop.permute.xlu0 %273
    %275 = vrot.lane.b32.xlu0 %v210, 8
    %v276 = vpop.permute.xlu0 %275
    %v277 = vsel %vm268, %v270, 0.0
    %v278 = vsel %vm268, %v272, 0.0
    %v279 = vsel %vm268, %v274, 0.0
    %v280 = vsel %vm268, %v276, 0.0
    %vm281 = vcmp.lt.s32.totalorder %v214, 120
    %282 = vrot.lane.b32.xlu0 %v195, 120
    %v283 = vpop.permute.xlu0 %282
    %284 = vrot.lane.b32.xlu0 %v200, 120
    %v285 = vpop.permute.xlu0 %284
    %286 = vrot.lane.b32.xlu0 %v205, 120
    %v287 = vpop.permute.xlu0 %286
    %288 = vrot.lane.b32.xlu0 %v210, 120
    %v289 = vpop.permute.xlu0 %288
    %v290 = vsel %vm281, %v283, 0.0
    %v291 = vsel %vm281, %v285, 0.0
    %v292 = vsel %vm281, %v287, 0.0
    %v293 = vsel %vm281, %v289, 0.0
    %v294 = vld [vmem:[#allocation7] sm:$0x1]
    %v295 = vlaneseq
    %v296 = vshrl.u32 %v295, 7
    %v297 = vsub.s32 0, %v296
    %v298 = vrot.slane %v294, %v297
    %v299 = vmul.f32 %v277, %v298
    %v300 = vmul.f32 %v278, %v298
    %v301 = vmul.f32 %v279, %v298
    %v302 = vmul.f32 %v280, %v298
    %v303 = vld [vmem:[#allocation7 + $0x1] sm:$0x1]
    %v304 = vlaneseq
    %v305 = vshrl.u32 %v304, 7
    %v306 = vsub.s32 0, %v305
    %v307 = vrot.slane %v303, %v306
    %v308 = vmul.f32 %v195, %v307
    %v309 = vmul.f32 %v200, %v307
    %v310 = vmul.f32 %v205, %v307
    %v311 = vmul.f32 %v210, %v307
    %v312 = vadd.f32 %v299, %v308
    %v313 = vadd.f32 %v300, %v309
    %v314 = vadd.f32 %v301, %v310
    %v315 = vadd.f32 %v302, %v311
    %v316 = vld [vmem:[#allocation7 + $0x2] sm:$0x1]
    %v317 = vlaneseq
    %v318 = vshrl.u32 %v317, 7
    %v319 = vsub.s32 0, %v318
    %v320 = vrot.slane %v316, %v319
    %v321 = vmul.f32 %v290, %v320
    %v322 = vmul.f32 %v291, %v320
    %v323 = vmul.f32 %v292, %v320
    %v324 = vmul.f32 %v293, %v320
    %v325 = vadd.f32 %v312, %v321
    %v326 = vadd.f32 %v313, %v322
    %v327 = vadd.f32 %v314, %v323
    %v328 = vadd.f32 %v315, %v324
    %vm329 = vcmp.ge.s32.totalorder %v264, 1
    %vm330 = vcmp.ge.s32.totalorder %v265, 1
    %vm331 = vcmp.ge.s32.totalorder %v266, 1
    %vm332 = vcmp.ge.s32.totalorder %v267, 1
    %v333 = vrot.slane %v325, 7
    %v334 = vrot.slane %v326, 7
    %v335 = vrot.slane %v327, 7
    %v336 = vrot.slane %v328, 7
    %vm337 = vcmp.lt.s32.totalorder %v216, 1
    %v338 = vsel %vm337, %v335, %v336
    %v339 = vsel %vm337, %v334, %v335
    %v340 = vsel %vm337, %v333, %v334
    %v341 = vsel %vm337, %v336, %v333
    %v342 = vsel %vm329, %v341, 0.0
    %v343 = vsel %vm330, %v340, 0.0
    %v344 = vsel %vm331, %v339, 0.0
    %v345 = vsel %vm332, %v338, 0.0
    %v346 = vld [vmem:[#allocation7 + $0x3] sm:$0x1]
    %v347 = vlaneseq
    %v348 = vshrl.u32 %v347, 7
    %v349 = vsub.s32 0, %v348
    %v350 = vrot.slane %v346, %v349
    %v351 = vmul.f32 %v277, %v350
    %v352 = vmul.f32 %v278, %v350
    %v353 = vmul.f32 %v279, %v350
    %v354 = vmul.f32 %v280, %v350
    %v355 = vld [vmem:[#allocation7 + $0x4] sm:$0x1]
    %v356 = vlaneseq
    %v357 = vshrl.u32 %v356, 7
    %v358 = vsub.s32 0, %v357
    %v359 = vrot.slane %v355, %v358
    %v360 = vmul.f32 %v195, %v359
    %v361 = vmul.f32 %v200, %v359
    %v362 = vmul.f32 %v205, %v359
    %v363 = vmul.f32 %v210, %v359
    %v364 = vadd.f32 %v351, %v360
    %v365 = vadd.f32 %v352, %v361
    %v366 = vadd.f32 %v353, %v362
    %v367 = vadd.f32 %v354, %v363
    %v368 = vld [vmem:[#allocation7 + $0x5] sm:$0x1]
    %v369 = vlaneseq
    %v370 = vshrl.u32 %v369, 7
    %v371 = vsub.s32 0, %v370
    %v372 = vrot.slane %v368, %v371
    %v373 = vmul.f32 %v290, %v372
    %v374 = vmul.f32 %v291, %v372
    %v375 = vmul.f32 %v292, %v372
    %v376 = vmul.f32 %v293, %v372
    %v377 = vadd.f32 %v364, %v373
    %v378 = vadd.f32 %v365, %v374
    %v379 = vadd.f32 %v366, %v375
    %v380 = vadd.f32 %v367, %v376
    %v381 = vadd.f32 %v342, %v377
    %v382 = vadd.f32 %v343, %v378
    %v383 = vadd.f32 %v344, %v379
    %v384 = vadd.f32 %v345, %v380
    %v385 = vld [vmem:[#allocation7 + $0x6] sm:$0x1]
    %v386 = vlaneseq
    %v387 = vshrl.u32 %v386, 7
    %v388 = vsub.s32 0, %v387
    %v389 = vrot.slane %v385, %v388
    %v390 = vmul.f32 %v277, %v389
    %v391 = vmul.f32 %v278, %v389
    %v392 = vmul.f32 %v279, %v389
    %v393 = vmul.f32 %v280, %v389
    %v394 = vld [vmem:[#allocation7 + $0x7] sm:$0x1]
    %v395 = vlaneseq
    %v396 = vshrl.u32 %v395, 7
    %v397 = vsub.s32 0, %v396
    %v398 = vrot.slane %v394, %v397
    %v399 = vmul.f32 %v195, %v398
    %v400 = vmul.f32 %v200, %v398
    %v401 = vmul.f32 %v205, %v398
    %v402 = vmul.f32 %v210, %v398
    %v403 = vadd.f32 %v390, %v399
    %v404 = vadd.f32 %v391, %v400
    %v405 = vadd.f32 %v392, %v401
    %v406 = vadd.f32 %v393, %v402
    %v407 = vld [vmem:[#allocation7 + $0x8] sm:$0x1]
    %v408 = vlaneseq
    %v409 = vshrl.u32 %v408, 7
    %v410 = vsub.s32 0, %v409
    %v411 = vrot.slane %v407, %v410
    %v412 = vmul.f32 %v290, %v411
    %v413 = vmul.f32 %v291, %v411
    %v414 = vmul.f32 %v292, %v411
    %v415 = vmul.f32 %v293, %v411
    %v416 = vadd.f32 %v403, %v412
    %v417 = vadd.f32 %v404, %v413
    %v418 = vadd.f32 %v405, %v414
    %v419 = vadd.f32 %v406, %v415
    %vm420 = vcmp.le.s32.totalorder %v264, 14
    %vm421 = vcmp.le.s32.totalorder %v265, 14
    %vm422 = vcmp.le.s32.totalorder %v266, 14
    %vm423 = vcmp.le.s32.totalorder %v267, 14
    %v424 = vrot.slane %v416, 1
    %v425 = vrot.slane %v417, 1
    %v426 = vrot.slane %v418, 1
    %v427 = vrot.slane %v419, 1
    %vm428 = vcmp.lt.s32.totalorder %v216, 7
    %v429 = vsel %vm428, %v426, %v427
    %v430 = vsel %vm428, %v425, %v426
    %v431 = vsel %vm428, %v424, %v425
    %v432 = vsel %vm428, %v427, %v424
    %v433 = vsel %vm420, %v431, 0.0
    %v434 = vsel %vm421, %v430, 0.0
    %v435 = vsel %vm422, %v429, 0.0
    %v436 = vsel %vm423, %v432, 0.0
    %v437 = vadd.f32 %v381, %v433
    %v438 = vadd.f32 %v382, %v434
    %v439 = vadd.f32 %v383, %v435
    %v440 = vadd.f32 %v384, %v436
    %v441 = vld [vmem:[%s4] sm:$0x1]
    %v443 = vlaneseq
    %v444 = vshrl.u32 %v443, 7
    %v445 = vsub.s32 0, %v444
    %v446 = vrot.slane %v441, %v445
    %v448 = vadd.f32 %v437, %v446
    %v449 = vadd.f32 %v438, %v446
    %v450 = vadd.f32 %v439, %v446
    %v451 = vadd.f32 %v440, %v446
    %v452 = vmax.f32 %v448, 0.0
    %v453 = vmax.f32 %v449, 0.0
    %v454 = vmax.f32 %v450, 0.0
    %v455 = vmax.f32 %v451, 0.0
    %v456 = vld [vmem:[#allocation8] sm:$0xff]
    %v457 = vld [vmem:[#allocation8 + $0x8] sm:$0xff]
    %v458 = vld [vmem:[#allocation8 + $0x10] sm:$0xff]
    %v459 = vld [vmem:[#allocation8 + $0x18] sm:$0xff]
    %v460 = vld [vmem:[#allocation8 + $0x20] sm:$0xff]
    %v461 = vld [vmem:[#allocation8 + $0x28] sm:$0xff]
    %v462 = vld [vmem:[#allocation8 + $0x30] sm:$0xff]
    %v463 = vld [vmem:[#allocation8 + $0x38] sm:$0xff]
    %v464 = vld [vmem:[#allocation8 + $0x40] sm:$0xff]
    %v465 = vld [vmem:[#allocation8 + $0x48] sm:$0xff]
    %v466 = vld [vmem:[#allocation8 + $0x50] sm:$0xff]
    %v467 = vld [vmem:[#allocation8 + $0x58] sm:$0xff]
    %v468 = vld [vmem:[#allocation8 + $0x60] sm:$0xff]
    %v469 = vld [vmem:[#allocation8 + $0x68] sm:$0xff]
    %v470 = vld [vmem:[#allocation8 + $0x70] sm:$0xff]
    %v471 = vld [vmem:[#allocation8 + $0x78] sm:$0xff]
    %v472 = vld [vmem:[#allocation8 + $0x80] sm:$0xff]
    %v473 = vld [vmem:[#allocation8 + $0x88] sm:$0xff]
    %v474 = vld [vmem:[#allocation8 + $0x90] sm:$0xff]
    %v475 = vld [vmem:[#allocation8 + $0x98] sm:$0xff]
    %v476 = vld [vmem:[#allocation8 + $0xa0] sm:$0xff]
    %v477 = vld [vmem:[#allocation8 + $0xa8] sm:$0xff]
    %v478 = vld [vmem:[#allocation8 + $0xb0] sm:$0xff]
    %v479 = vld [vmem:[#allocation8 + $0xb8] sm:$0xff]
    %v480 = vld [vmem:[#allocation8 + $0xc0] sm:$0xff]
    %v481 = vld [vmem:[#allocation8 + $0xc8] sm:$0xff]
    %v482 = vld [vmem:[#allocation8 + $0xd0] sm:$0xff]
    %v483 = vld [vmem:[#allocation8 + $0xd8] sm:$0xff]
    %v484 = vld [vmem:[#allocation8 + $0xe0] sm:$0xff]
    %v485 = vld [vmem:[#allocation8 + $0xe8] sm:$0xff]
    %v486 = vld [vmem:[#allocation8 + $0xf0] sm:$0xff]
    %v487 = vld [vmem:[#allocation8 + $0xf8] sm:$0xff]
    %v488 = vld [vmem:[%s6] sm:$0x3]
    %v490 = vlaneseq
    %v491 = vshrl.u32 %v490, 7
    %v492 = vsub.s32 0, %v491
    %v493 = vrot.slane %v488, %v492
    %v494 = vlaneseq
    %v495 = vshrl.u32 %v494, 7
    %v496 = vsub.s32 1, %v495
    %v497 = vrot.slane %v488, %v496
    %500 = vmatprep.subr.mxu0 %v487
    %501 = vmatpush1.msra.mxu0 %v486
    %502 = vmatprep.subr.mxu0 %v485
    %503 = vmatpush1.msra.mxu0 %v484
    %504 = vmatprep.subr.mxu0 %v483
    %505 = vmatpush1.msra.mxu0 %v482
    %506 = vmatprep.subr.mxu0 %v481
    %507 = vmatpush1.msra.mxu0 %v480
    %508 = vmatprep.subr.mxu0 %v479
    %509 = vmatpush1.msra.mxu0 %v478
    %510 = vmatprep.subr.mxu0 %v477
    %511 = vmatpush1.msra.mxu0 %v476
    %512 = vmatprep.subr.mxu0 %v475
    %513 = vmatpush1.msra.mxu0 %v474
    %514 = vmatprep.subr.mxu0 %v473
    %515 = vmatpush1.msra.mxu0 %v472
    %516 = vmatprep.subr.mxu0 %v471
    %517 = vmatpush1.msra.mxu0 %v470
    %518 = vmatprep.subr.mxu0 %v469
    %519 = vmatpush1.msra.mxu0 %v468
    %520 = vmatprep.subr.mxu0 %v467
    %521 = vmatpush1.msra.mxu0 %v466
    %522 = vmatprep.subr.mxu0 %v465
    %523 = vmatpush1.msra.mxu0 %v464
    %524 = vmatprep.subr.mxu0 %v463
    %525 = vmatpush1.msra.mxu0 %v462
    %526 = vmatprep.subr.mxu0 %v461
    %527 = vmatpush1.msra.mxu0 %v460
    %528 = vmatprep.subr.mxu0 %v459
    %529 = vmatpush1.msra.mxu0 %v458
    %530 = vmatprep.subr.mxu0 %v457
    %531 = vmatpush1.msra.mxu0 %v456
    %532 = vmatprep.subr.mxu0 0.0
    %533 = vmatpush2.msra.mxu0 0.0
    %534 = vmatprep.subr.mxu0 0.0
    %535 = vmatpush2.msra.mxu0 0.0
    %536 = vmatprep.subr.mxu0 0.0
    %537 = vmatpush2.msra.mxu0 0.0
    %538 = vmatprep.subr.mxu0 0.0
    %539 = vmatpush2.msra.mxu0 0.0
    %540 = vmatprep.subr.mxu0 0.0
    %541 = vmatpush2.msra.mxu0 0.0
    %542 = vmatprep.subr.mxu0 0.0
    %543 = vmatpush2.msra.mxu0 0.0
    %544 = vmatprep.subr.mxu0 0.0
    %545 = vmatpush2.msra.mxu0 0.0
    %546 = vmatprep.subr.mxu0 0.0
    %547 = vmatpush2.msra.mxu0 0.0
    %548 = vmatprep.subr.mxu0 0.0
    %549 = vmatpush2.msra.mxu0 0.0
    %550 = vmatprep.subr.mxu0 0.0
    %551 = vmatpush2.msra.mxu0 0.0
    %552 = vmatprep.subr.mxu0 0.0
    %553 = vmatpush2.msra.mxu0 0.0
    %554 = vmatprep.subr.mxu0 0.0
    %555 = vmatpush2.msra.mxu0 0.0
    %556 = vmatprep.subr.mxu0 0.0
    %557 = vmatpush2.msra.mxu0 0.0
    %558 = vmatprep.subr.mxu0 0.0
    %559 = vmatpush2.msra.mxu0 0.0
    %560 = vmatprep.subr.mxu0 0.0
    %561 = vmatpush2.msra.mxu0 0.0
    %562 = vmatprep.subr.mxu0 0.0
    %563 = vmatpush2.msra.mxu0 0.0
    %564 = vmatprep.mubr.f32.mxu0 0.0
    %565 = vmatmul.mubr.f32.gmra.mxu0 %v452
    %v566 = vpop.f32.mrf.mxu0
    %v567 = vadd.f32 %v493, %v566
    %v568 = vpop.f32.mrf.mxu0
    %v569 = vadd.f32 %v497, %v568
    %570 = vmatprep.mubr.f32.mxu0 0.0
    %571 = vmatmul.mubr.f32.gmra.mxu0 %v453
    %v572 = vpop.f32.mrf.mxu0
    %v573 = vadd.f32 %v493, %v572
    %v574 = vpop.f32.mrf.mxu0
    %v575 = vadd.f32 %v497, %v574
    %576 = vmatprep.mubr.f32.mxu0 0.0
    %577 = vmatmul.mubr.f32.gmra.mxu0 %v454
    %v578 = vpop.f32.mrf.mxu0
    %v579 = vadd.f32 %v493, %v578
    %v580 = vpop.f32.mrf.mxu0
    %v581 = vadd.f32 %v497, %v580
    %582 = vmatprep.mubr.f32.mxu0 0.0
    %583 = vmatmul.mubr.f32.gmra.mxu0 %v455
    %v584 = vpop.f32.mrf.mxu0
    %v585 = vadd.f32 %v493, %v584
    %v586 = vpop.f32.mrf.mxu0
    %v587 = vadd.f32 %v497, %v586
    %588 = vdwg.mxu0
    %v589 = vadd.s32 %v214, 128
    %vm590 = vcmp.ge.s32.totalorder %v214, 16
    %vm591 = vcmp.ge.s32.totalorder %v589, 16
    %592 = vrot.lane.b32.xlu0 %v567, 16
    %v593 = vpop.permute.xlu0 %592
    %594 = vrot.lane.b32.xlu0 %v573, 16
    %v595 = vpop.permute.xlu0 %594
    %596 = vrot.lane.b32.xlu0 %v579, 16
    %v597 = vpop.permute.xlu0 %596
    %598 = vrot.lane.b32.xlu0 %v585, 16
    %v599 = vpop.permute.xlu0 %598
    %600 = vrot.lane.b32.xlu0 %v569, 16
    %v601 = vpop.permute.xlu0 %600
    %602 = vrot.lane.b32.xlu0 %v575, 16
    %v603 = vpop.permute.xlu0 %602
    %604 = vrot.lane.b32.xlu0 %v581, 16
    %v605 = vpop.permute.xlu0 %604
    %606 = vrot.lane.b32.xlu0 %v587, 16
    %v607 = vpop.permute.xlu0 %606
    %vm608 = vcmp.lt.s32.totalorder %v214, 16
    %v609 = vsel %vm608, %v593, %v601
    %v610 = vsel %vm608, %v595, %v603
    %v611 = vsel %vm608, %v597, %v605
    %v612 = vsel %vm608, %v599, %v607
    %v613 = vsel %vm608, %v601, %v593
    %v614 = vsel %vm608, %v603, %v595
    %v615 = vsel %vm608, %v605, %v597
    %v616 = vsel %vm608, %v607, %v599
    %v617 = vsel %vm590, %v613, 0.0
    %v618 = vsel %vm591, %v609, 0.0
    %v619 = vsel %vm590, %v614, 0.0
    %v620 = vsel %vm591, %v610, 0.0
    %v621 = vsel %vm590, %v615, 0.0
    %v622 = vsel %vm591, %v611, 0.0
    %v623 = vsel %vm590, %v616, 0.0
    %v624 = vsel %vm591, %v612, 0.0
    %vm625 = vcmp.lt.s32.totalorder %v214, 240
    %vm626 = vcmp.lt.s32.totalorder %v589, 240
    %627 = vrot.lane.b32.xlu0 %v567, 112
    %v628 = vpop.permute.xlu0 %627
    %629 = vrot.lane.b32.xlu0 %v573, 112
    %v630 = vpop.permute.xlu0 %629
    %631 = vrot.lane.b32.xlu0 %v579, 112
    %v632 = vpop.permute.xlu0 %631
    %633 = vrot.lane.b32.xlu0 %v585, 112
    %v634 = vpop.permute.xlu0 %633
    %635 = vrot.lane.b32.xlu0 %v569, 112
    %v636 = vpop.permute.xlu0 %635
    %637 = vrot.lane.b32.xlu0 %v575, 112
    %v638 = vpop.permute.xlu0 %637
    %639 = vrot.lane.b32.xlu0 %v581, 112
    %v640 = vpop.permute.xlu0 %639
    %641 = vrot.lane.b32.xlu0 %v587, 112
    %v642 = vpop.permute.xlu0 %641
    %vm643 = vcmp.lt.s32.totalorder %v214, 112
    %v644 = vsel %vm643, %v628, %v636
    %v645 = vsel %vm643, %v630, %v638
    %v646 = vsel %vm643, %v632, %v640
    %v647 = vsel %vm643, %v634, %v642
    %v648 = vsel %vm643, %v636, %v628
    %v649 = vsel %vm643, %v638, %v630
    %v650 = vsel %vm643, %v640, %v632
    %v651 = vsel %vm643, %v642, %v634
    %v652 = vsel %vm625, %v644, 0.0
    %v653 = vsel %vm626, %v648, 0.0
    %v654 = vsel %vm625, %v645, 0.0
    %v655 = vsel %vm626, %v649, 0.0
    %v656 = vsel %vm625, %v646, 0.0
    %v657 = vsel %vm626, %v650, 0.0
    %v658 = vsel %vm625, %v647, 0.0
    %v659 = vsel %vm626, %v651, 0.0
    %v660 = vld [vmem:[#allocation10] ss:$8 sm:$0x3]
    %v662 = vlaneseq
    %v663 = vshrl.u32 %v662, 7
    %v664 = vsub.s32 0, %v663
    %v665 = vrot.slane %v660, %v664
    %v666 = vlaneseq
    %v667 = vshrl.u32 %v666, 7
    %v668 = vsub.s32 1, %v667
    %v669 = vrot.slane %v660, %v668
    %v672 = vmul.f32 %v617, %v665
    %v673 = vmul.f32 %v618, %v669
    %v674 = vmul.f32 %v619, %v665
    %v675 = vmul.f32 %v620, %v669
    %v676 = vmul.f32 %v621, %v665
    %v677 = vmul.f32 %v622, %v669
    %v678 = vmul.f32 %v623, %v665
    %v679 = vmul.f32 %v624, %v669
    %s680 = scalar_lea.vmem [#allocation10], 1
    %v681 = vld [vmem:[%s680] ss:$8 sm:$0x3]
    %v683 = vlaneseq
    %v684 = vshrl.u32 %v683, 7
    %v685 = vsub.s32 0, %v684
    %v686 = vrot.slane %v681, %v685
    %v687 = vlaneseq
    %v688 = vshrl.u32 %v687, 7
    %v689 = vsub.s32 1, %v688
    %v690 = vrot.slane %v681, %v689
    %v693 = vmul.f32 %v567, %v686
    %v694 = vmul.f32 %v569, %v690
    %v695 = vmul.f32 %v573, %v686
    %v696 = vmul.f32 %v575, %v690
    %v697 = vmul.f32 %v579, %v686
    %v698 = vmul.f32 %v581, %v690
    %v699 = vmul.f32 %v585, %v686
    %v700 = vmul.f32 %v587, %v690
    %v701 = vadd.f32 %v672, %v693
    %v702 = vadd.f32 %v673, %v694
    %v703 = vadd.f32 %v674, %v695
    %v704 = vadd.f32 %v675, %v696
    %v705 = vadd.f32 %v676, %v697
    %v706 = vadd.f32 %v677, %v698
    %v707 = vadd.f32 %v678, %v699
    %v708 = vadd.f32 %v679, %v700
    %s709 = scalar_lea.vmem [#allocation10], 2
    %v710 = vld [vmem:[%s709] ss:$8 sm:$0x3]
    %v712 = vlaneseq
    %v713 = vshrl.u32 %v712, 7
    %v714 = vsub.s32 0, %v713
    %v715 = vrot.slane %v710, %v714
    %v716 = vlaneseq
    %v717 = vshrl.u32 %v716, 7
    %v718 = vsub.s32 1, %v717
    %v719 = vrot.slane %v710, %v718
    %v722 = vmul.f32 %v652, %v715
    %v723 = vmul.f32 %v653, %v719
    %v724 = vmul.f32 %v654, %v715
    %v725 = vmul.f32 %v655, %v719
    %v726 = vmul.f32 %v656, %v715
    %v727 = vmul.f32 %v657, %v719
    %v728 = vmul.f32 %v658, %v715
    %v729 = vmul.f32 %v659, %v719
    %v730 = vadd.f32 %v701, %v722
    %v731 = vadd.f32 %v702, %v723
    %v732 = vadd.f32 %v703, %v724
    %v733 = vadd.f32 %v704, %v725
    %v734 = vadd.f32 %v705, %v726
    %v735 = vadd.f32 %v706, %v727
    %v736 = vadd.f32 %v707, %v728
    %v737 = vadd.f32 %v708, %v729
    %v738 = vrot.slane %v730, 7
    %v739 = vrot.slane %v731, 7
    %v740 = vrot.slane %v732, 7
    %v741 = vrot.slane %v733, 7
    %v742 = vrot.slane %v734, 7
    %v743 = vrot.slane %v735, 7
    %v744 = vrot.slane %v736, 7
    %v745 = vrot.slane %v737, 7
    %v746 = vsel %vm337, %v742, %v744
    %v747 = vsel %vm337, %v743, %v745
    %v748 = vsel %vm337, %v740, %v742
    %v749 = vsel %vm337, %v741, %v743
    %v750 = vsel %vm337, %v738, %v740
    %v751 = vsel %vm337, %v739, %v741
    %v752 = vsel %vm337, %v744, %v738
    %v753 = vsel %vm337, %v745, %v739
    %v754 = vsel %vm329, %v752, 0.0
    %v755 = vsel %vm329, %v753, 0.0
    %v756 = vsel %vm330, %v750, 0.0
    %v757 = vsel %vm330, %v751, 0.0
    %v758 = vsel %vm331, %v748, 0.0
    %v759 = vsel %vm331, %v749, 0.0
    %v760 = vsel %vm332, %v746, 0.0
    %v761 = vsel %vm332, %v747, 0.0
    %s762 = scalar_lea.vmem [#allocation10], 3
    %v763 = vld [vmem:[%s762] ss:$8 sm:$0x3]
    %v765 = vlaneseq
    %v766 = vshrl.u32 %v765, 7
    %v767 = vsub.s32 0, %v766
    %v768 = vrot.slane %v763, %v767
    %v769 = vlaneseq
    %v770 = vshrl.u32 %v769, 7
    %v771 = vsub.s32 1, %v770
    %v772 = vrot.slane %v763, %v771
    %v775 = vmul.f32 %v617, %v768
    %v776 = vmul.f32 %v618, %v772
    %v777 = vmul.f32 %v619, %v768
    %v778 = vmul.f32 %v620, %v772
    %v779 = vmul.f32 %v621, %v768
    %v780 = vmul.f32 %v622, %v772
    %v781 = vmul.f32 %v623, %v768
    %v782 = vmul.f32 %v624, %v772
    %s783 = scalar_lea.vmem [#allocation10], 4
    %v784 = vld [vmem:[%s783] ss:$8 sm:$0x3]
    %v786 = vlaneseq
    %v787 = vshrl.u32 %v786, 7
    %v788 = vsub.s32 0, %v787
    %v789 = vrot.slane %v784, %v788
    %v790 = vlaneseq
    %v791 = vshrl.u32 %v790, 7
    %v792 = vsub.s32 1, %v791
    %v793 = vrot.slane %v784, %v792
    %v796 = vmul.f32 %v567, %v789
    %v797 = vmul.f32 %v569, %v793
    %v798 = vmul.f32 %v573, %v789
    %v799 = vmul.f32 %v575, %v793
    %v800 = vmul.f32 %v579, %v789
    %v801 = vmul.f32 %v581, %v793
    %v802 = vmul.f32 %v585, %v789
    %v803 = vmul.f32 %v587, %v793
    %v804 = vadd.f32 %v775, %v796
    %v805 = vadd.f32 %v776, %v797
    %v806 = vadd.f32 %v777, %v798
    %v807 = vadd.f32 %v778, %v799
    %v808 = vadd.f32 %v779, %v800
    %v809 = vadd.f32 %v780, %v801
    %v810 = vadd.f32 %v781, %v802
    %v811 = vadd.f32 %v782, %v803
    %s812 = scalar_lea.vmem [#allocation10], 5
    %v813 = vld [vmem:[%s812] ss:$8 sm:$0x3]
    %v815 = vlaneseq
    %v816 = vshrl.u32 %v815, 7
    %v817 = vsub.s32 0, %v816
    %v818 = vrot.slane %v813, %v817
    %v819 = vlaneseq
    %v820 = vshrl.u32 %v819, 7
    %v821 = vsub.s32 1, %v820
    %v822 = vrot.slane %v813, %v821
    %v825 = vmul.f32 %v652, %v818
    %v826 = vmul.f32 %v653, %v822
    %v827 = vmul.f32 %v654, %v818
    %v828 = vmul.f32 %v655, %v822
    %v829 = vmul.f32 %v656, %v818
    %v830 = vmul.f32 %v657, %v822
    %v831 = vmul.f32 %v658, %v818
    %v832 = vmul.f32 %v659, %v822
    %v833 = vadd.f32 %v804, %v825
    %v834 = vadd.f32 %v805, %v826
    %v835 = vadd.f32 %v806, %v827
    %v836 = vadd.f32 %v807, %v828
    %v837 = vadd.f32 %v808, %v829
    %v838 = vadd.f32 %v809, %v830
    %v839 = vadd.f32 %v810, %v831
    %v840 = vadd.f32 %v811, %v832
    %v841 = vadd.f32 %v754, %v833
    %v842 = vadd.f32 %v755, %v834
    %v843 = vadd.f32 %v756, %v835
    %v844 = vadd.f32 %v757, %v836
    %v845 = vadd.f32 %v758, %v837
    %v846 = vadd.f32 %v759, %v838
    %v847 = vadd.f32 %v760, %v839
    %v848 = vadd.f32 %v761, %v840
    %s849 = scalar_lea.vmem [#allocation10], 6
    %v850 = vld [vmem:[%s849] ss:$8 sm:$0x3]
    %v852 = vlaneseq
    %v853 = vshrl.u32 %v852, 7
    %v854 = vsub.s32 0, %v853
    %v855 = vrot.slane %v850, %v854
    %v856 = vlaneseq
    %v857 = vshrl.u32 %v856, 7
    %v858 = vsub.s32 1, %v857
    %v859 = vrot.slane %v850, %v858
    %v862 = vmul.f32 %v617, %v855
    %v863 = vmul.f32 %v618, %v859
    %v864 = vmul.f32 %v619, %v855
    %v865 = vmul.f32 %v620, %v859
    %v866 = vmul.f32 %v621, %v855
    %v867 = vmul.f32 %v622, %v859
    %v868 = vmul.f32 %v623, %v855
    %v869 = vmul.f32 %v624, %v859
    %s870 = scalar_lea.vmem [#allocation10], 7
    %v871 = vld [vmem:[%s870] ss:$8 sm:$0x3]
    %v873 = vlaneseq
    %v874 = vshrl.u32 %v873, 7
    %v875 = vsub.s32 0, %v874
    %v876 = vrot.slane %v871, %v875
    %v877 = vlaneseq
    %v878 = vshrl.u32 %v877, 7
    %v879 = vsub.s32 1, %v878
    %v880 = vrot.slane %v871, %v879
    %v883 = vmul.f32 %v567, %v876
    %v884 = vmul.f32 %v569, %v880
    %v885 = vmul.f32 %v573, %v876
    %v886 = vmul.f32 %v575, %v880
    %v887 = vmul.f32 %v579, %v876
    %v888 = vmul.f32 %v581, %v880
    %v889 = vmul.f32 %v585, %v876
    %v890 = vmul.f32 %v587, %v880
    %v891 = vadd.f32 %v862, %v883
    %v892 = vadd.f32 %v863, %v884
    %v893 = vadd.f32 %v864, %v885
    %v894 = vadd.f32 %v865, %v886
    %v895 = vadd.f32 %v866, %v887
    %v896 = vadd.f32 %v867, %v888
    %v897 = vadd.f32 %v868, %v889
    %v898 = vadd.f32 %v869, %v890
    %s899 = scalar_lea.vmem [#allocation10], 16
    %v900 = vld [vmem:[%s899] ss:$8 sm:$0x3]
    %v902 = vlaneseq
    %v903 = vshrl.u32 %v902, 7
    %v904 = vsub.s32 0, %v903
    %v905 = vrot.slane %v900, %v904
    %v906 = vlaneseq
    %v907 = vshrl.u32 %v906, 7
    %v908 = vsub.s32 1, %v907
    %v909 = vrot.slane %v900, %v908
    %v912 = vmul.f32 %v652, %v905
    %v913 = vmul.f32 %v653, %v909
    %v914 = vmul.f32 %v654, %v905
    %v915 = vmul.f32 %v655, %v909
    %v916 = vmul.f32 %v656, %v905
    %v917 = vmul.f32 %v657, %v909
    %v918 = vmul.f32 %v658, %v905
    %v919 = vmul.f32 %v659, %v909
    %v920 = vadd.f32 %v891, %v912
    %v921 = vadd.f32 %v892, %v913
    %v922 = vadd.f32 %v893, %v914
    %v923 = vadd.f32 %v894, %v915
    %v924 = vadd.f32 %v895, %v916
    %v925 = vadd.f32 %v896, %v917
    %v926 = vadd.f32 %v897, %v918
    %v927 = vadd.f32 %v898, %v919
    %v928 = vrot.slane %v920, 1
    %v929 = vrot.slane %v921, 1
    %v930 = vrot.slane %v922, 1
    %v931 = vrot.slane %v923, 1
    %v932 = vrot.slane %v924, 1
    %v933 = vrot.slane %v925, 1
    %v934 = vrot.slane %v926, 1
    %v935 = vrot.slane %v927, 1
    %v936 = vsel %vm428, %v932, %v934
    %v937 = vsel %vm428, %v933, %v935
    %v938 = vsel %vm428, %v930, %v932
    %v939 = vsel %vm428, %v931, %v933
    %v940 = vsel %vm428, %v928, %v930
    %v941 = vsel %vm428, %v929, %v931
    %v942 = vsel %vm428, %v934, %v928
    %v943 = vsel %vm428, %v935, %v929
    %v944 = vsel %vm420, %v940, 0.0
    %v945 = vsel %vm420, %v941, 0.0
    %v946 = vsel %vm421, %v938, 0.0
    %v947 = vsel %vm421, %v939, 0.0
    %v948 = vsel %vm422, %v936, 0.0
    %v949 = vsel %vm422, %v937, 0.0
    %v950 = vsel %vm423, %v942, 0.0
    %v951 = vsel %vm423, %v943, 0.0
    %v952 = vadd.f32 %v841, %v944
    %v953 = vadd.f32 %v842, %v945
    %v954 = vadd.f32 %v843, %v946
    %v955 = vadd.f32 %v844, %v947
    %v956 = vadd.f32 %v845, %v948
    %v957 = vadd.f32 %v846, %v949
    %v958 = vadd.f32 %v847, %v950
    %v959 = vadd.f32 %v848, %v951
    %v960 = vld [vmem:[%s8] sm:$0x3]
    %v962 = vlaneseq
    %v963 = vshrl.u32 %v962, 7
    %v964 = vsub.s32 0, %v963
    %v965 = vrot.slane %v960, %v964
    %v966 = vlaneseq
    %v967 = vshrl.u32 %v966, 7
    %v968 = vsub.s32 1, %v967
    %v969 = vrot.slane %v960, %v968
    %v972 = vadd.f32 %v952, %v965
    %v973 = vadd.f32 %v953, %v969
    %v974 = vadd.f32 %v954, %v965
    %v975 = vadd.f32 %v955, %v969
    %v976 = vadd.f32 %v956, %v965
    %v977 = vadd.f32 %v957, %v969
    %v978 = vadd.f32 %v958, %v965
    %v979 = vadd.f32 %v959, %v969
    %v980 = vmax.f32 %v972, 0.0
    %v981 = vmax.f32 %v973, 0.0
    %v982 = vmax.f32 %v974, 0.0
    %v983 = vmax.f32 %v975, 0.0
    %v984 = vmax.f32 %v976, 0.0
    %v985 = vmax.f32 %v977, 0.0
    %v986 = vmax.f32 %v978, 0.0
    %v987 = vmax.f32 %v979, 0.0
    %988 = vst [vmem:[#allocation11] sm:$0xff] %v980
    %989 = vst [vmem:[#allocation11 + $0x8] sm:$0xff] %v981
    %990 = vst [vmem:[#allocation11 + $0x10] sm:$0xff] %v982
    %991 = vst [vmem:[#allocation11 + $0x18] sm:$0xff] %v983
    %992 = vst [vmem:[#allocation11 + $0x20] sm:$0xff] %v984
    %993 = vst [vmem:[#allocation11 + $0x28] sm:$0xff] %v985
    %994 = vst [vmem:[#allocation11 + $0x30] sm:$0xff] %v986
    %995 = vst [vmem:[#allocation11 + $0x38] sm:$0xff] %v987
    // Predicated region
    $region58: #{tpu_custom_call.1} parent=1 // pred_check
      _
    $region59: #{tpu_custom_call.1} parent=1 // pred_check_branch
      %997 = sbr.rel (0) target = $region61
    $region60: #{tpu_custom_call.1} parent=1 // pred_region
      %s999 = ssub.s32 1024, 1024
      %1000 = vsyncadd [#allocation4], %s999
      %s1001 = sshll.u32 [#allocation11], 4
      %s1002 = int_to_ptr.vmem [resolvable:$true] %s1001
      %1007 = dma.vmem_to_hbm [thread:$0]  %s1002, 1024, %s9, [#allocation4], 256, 256, 16
    $region61: #{tpu_custom_call.1} parent=1 // pred_fallthru
      _
    // Predicated region
    $region62: #{tpu_custom_call.1} parent=1 // pred_check
      _
    $region63: #{tpu_custom_call.1} parent=1 // pred_check_branch
      %1009 = sbr.rel (0) target = $region65
    $region64: #{tpu_custom_call.1} parent=1 // pred_region
      %1010 = dma.done [#allocation4], 1024
    $region65: #{tpu_custom_call.1} parent=1 // pred_fallthru
      _
    %1011 = vsyncpa [#allocation3], 1
    %1012 = vsyncpa [#allocation6], 1
    %1013 = vsyncpa [#allocation9], 1
    %1014 = vsyncpa [#allocation4], 1

</llo_original>
